<compile_context>
chip_gen: v7x
topology: tpu7x:2x2x1
jax: 0.10.0
libtpu: 0.0.40
codegen_flags: <defaults>
</compile_context>

<pallas_src>
import functools

import jax
import jax.numpy as jnp
from jax import lax
from jax.experimental import pallas as pl
from jax.experimental.pallas import tpu as pltpu

EPS = 1e-5
LANE = 128                     # TPU vreg lane width -> lane-dense channel dim
MXU_DTYPE = jnp.bfloat16       # MXU inputs in bf16, accumulation in f32


def _round_up(x, m):
    return ((x + m - 1) // m) * m


def _choose_bm(m, target=512):
    """Row-block size: multiple of 8, capped at `target` (VMEM-safe on v7x's
    32 MiB scoped default even at real ResNet channel counts). Returns
    (bm, padded_M) with padded_M a multiple of bm."""
    bm = min(target, _round_up(m, 8))
    return bm, _round_up(m, bm)


# --------------------------- Pallas kernels ----------------------------------

def _conv_stats_kernel(x_ref, w_ref, b_ref, y_ref, sum_ref, ssq_ref, *, bm, m_valid):
    """(bm, K) @ (K, Cp) + bias on the MXU, plus fused per-channel sum and
    sum-of-squares accumulation into resident (1, Cp) outputs."""
    i = pl.program_id(0)

    @pl.when(i == 0)
    def _():
        sum_ref[...] = jnp.zeros_like(sum_ref)
        ssq_ref[...] = jnp.zeros_like(ssq_ref)

    y = jnp.dot(x_ref[...], w_ref[...], preferred_element_type=jnp.float32)
    y = y + b_ref[...]
    y_ref[...] = y

    # Mask padded tail rows out of the statistics.
    row = i * bm + lax.broadcasted_iota(jnp.int32, (bm, 1), 0)
    valid = jnp.where(row < m_valid, 1.0, 0.0)
    yv = y * valid
    sum_ref[...] += jnp.sum(yv, axis=0, keepdims=True)
    ssq_ref[...] += jnp.sum(yv * y, axis=0, keepdims=True)


def conv_bn_stats(patches, w, b, bm, m_valid):
    """Conv-as-matmul + bias + BN batch statistics in one pass over HBM.

    patches: (Mp, K) bf16, w: (K, Cp) bf16, b: (1, Cp) f32, Mp % bm == 0.
    Returns y (Mp, Cp) f32, channel sums (1, Cp), channel sum-of-squares (1, Cp).
    """
    mp, k = patches.shape
    cp = w.shape[1]
    row_spec = pl.BlockSpec((bm, cp), lambda i: (i, 0))
    vec_spec = pl.BlockSpec((1, cp), lambda i: (0, 0))
    return pl.pallas_call(
        functools.partial(_conv_stats_kernel, bm=bm, m_valid=m_valid),
        out_shape=(jax.ShapeDtypeStruct((mp, cp), jnp.float32),
                   jax.ShapeDtypeStruct((1, cp), jnp.float32),
                   jax.ShapeDtypeStruct((1, cp), jnp.float32)),
        grid=(mp // bm,),
        in_specs=[pl.BlockSpec((bm, k), lambda i: (i, 0)),
                  pl.BlockSpec((k, cp), lambda i: (0, 0)),
                  vec_spec],
        out_specs=(row_spec, vec_spec, vec_spec),
        # Resident stat accumulators -> the row axis must be "arbitrary".
        compiler_params=pltpu.CompilerParams(dimension_semantics=("arbitrary",)),
    )(patches, w, b)


def _scale_shift(sum_ref, ssq_ref, g_ref, be_ref, inv_m):
    mean = sum_ref[...] * inv_m
    var = ssq_ref[...] * inv_m - mean * mean          # biased variance
    scale = g_ref[...] * lax.rsqrt(var + EPS)
    shift = be_ref[...] - mean * scale
    return scale, shift


def _bn_relu_kernel(y_ref, sum_ref, ssq_ref, g_ref, be_ref, o_ref, *, inv_m):
    scale, shift = _scale_shift(sum_ref, ssq_ref, g_ref, be_ref, inv_m)
    o_ref[...] = jnp.maximum(y_ref[...] * scale + shift, 0.0).astype(o_ref.dtype)


def _bn_addres_relu_kernel(y_ref, sum_ref, ssq_ref, g_ref, be_ref, r_ref, o_ref, *, inv_m):
    scale, shift = _scale_shift(sum_ref, ssq_ref, g_ref, be_ref, inv_m)
    z = y_ref[...] * scale + shift + r_ref[...]
    o_ref[...] = jnp.maximum(z, 0.0).astype(o_ref.dtype)


def _bn_convres_relu_kernel(y_ref, sum_ref, ssq_ref, g_ref, be_ref,
                            xs_ref, w3_ref, b3_ref, o_ref, *, inv_m):
    scale, shift = _scale_shift(sum_ref, ssq_ref, g_ref, be_ref, inv_m)
    res = jnp.dot(xs_ref[...], w3_ref[...], preferred_element_type=jnp.float32)
    res = res + b3_ref[...]
    z = y_ref[...] * scale + shift + res
    o_ref[...] = jnp.maximum(z, 0.0).astype(o_ref.dtype)


def bn_finalize(y, sums, ssq, gamma, beta, bm, m_valid, *,
                residual=None, shortcut=None, out_dtype=jnp.float32):
    """Fused BN finalize + normalize (+ residual add | + 1x1-conv shortcut)
    + ReLU, row-tiled and pipelined ("parallel" row axis)."""
    mp, cp = y.shape
    inv_m = 1.0 / float(m_valid)
    row_spec = pl.BlockSpec((bm, cp), lambda i: (i, 0))
    vec_spec = pl.BlockSpec((1, cp), lambda i: (0, 0))
    common = dict(
        out_shape=jax.ShapeDtypeStruct((mp, cp), out_dtype),
        grid=(mp // bm,),
        out_specs=row_spec,
        compiler_params=pltpu.CompilerParams(dimension_semantics=("parallel",)),
    )
    if shortcut is not None:
        xs, w3, b3 = shortcut
        k3 = xs.shape[1]
        return pl.pallas_call(
            functools.partial(_bn_convres_relu_kernel, inv_m=inv_m),
            in_specs=[row_spec, vec_spec, vec_spec, vec_spec, vec_spec,
                      pl.BlockSpec((bm, k3), lambda i: (i, 0)),
                      pl.BlockSpec((k3, cp), lambda i: (0, 0)),
                      vec_spec],
            **common,
        )(y, sums, ssq, gamma, beta, xs, w3, b3)
    if residual is not None:
        return pl.pallas_call(
            functools.partial(_bn_addres_relu_kernel, inv_m=inv_m),
            in_specs=[row_spec, vec_spec, vec_spec, vec_spec, vec_spec, row_spec],
            **common,
        )(y, sums, ssq, gamma, beta, residual)
    return pl.pallas_call(
        functools.partial(_bn_relu_kernel, inv_m=inv_m),
        in_specs=[row_spec, vec_spec, vec_spec, vec_spec, vec_spec],
        **common,
    )(y, sums, ssq, gamma, beta)


# --------------------------- JAX glue -----------------------------------------

def im2col(x_nhwc, ksize, pad, stride):
    """Conv patches. Returns (N*Ho*Wo, k*k*C), feature order (kh, kw, c)."""
    n, h, w, c = x_nhwc.shape
    xp = jnp.pad(x_nhwc, ((0, 0), (pad, pad), (pad, pad), (0, 0)))
    ho = (h + 2 * pad - ksize) // stride + 1
    wo = (w + 2 * pad - ksize) // stride + 1
    cols = []
    for kh in range(ksize):
        for kw in range(ksize):
            cols.append(xp[:, kh:kh + stride * ho:stride, kw:kw + stride * wo:stride, :])
    patches = jnp.concatenate(cols, axis=-1)
    return patches.reshape(n * ho * wo, ksize * ksize * c), ho, wo


def _w_to_mat(w, cp):
    """PyTorch (Cout, Cin, kh, kw) -> (kh*kw*Cin, Cp) bf16, Cout padded to Cp."""
    cout = w.shape[0]
    m = jnp.transpose(w, (2, 3, 1, 0)).reshape(-1, cout)
    return jnp.pad(m, ((0, 0), (0, cp - cout))).astype(MXU_DTYPE)


def _vec(v, cp, dtype=jnp.float32):
    v = v.reshape(1, -1)
    return jnp.pad(v, ((0, 0), (0, cp - v.shape[1]))).astype(dtype)


def _pad_rows(a, mp):
    return jnp.pad(a, ((0, mp - a.shape[0]), (0, 0)))


def residual_forward(x_nchw, p, use1_1conv=False, strides=1):
    n, cin, h, w = x_nchw.shape
    cout = p["w1"].shape[0]
    cp = _round_up(cout, LANE)                     # lane-dense output channels
    x_nhwc = jnp.transpose(x_nchw, (0, 2, 3, 1)).astype(jnp.float32)

    ho = (h + 2 - 3) // strides + 1
    wo = (w + 2 - 3) // strides + 1
    m = n * ho * wo
    bm, mp = _choose_bm(m)

    # ---- y1 = relu(bn1(conv1(x))): matmul+bias+stats, then normalize+relu ----
    patches1, _, _ = im2col(x_nhwc.astype(MXU_DTYPE), 3, 1, strides)
    y1, s1, q1 = conv_bn_stats(_pad_rows(patches1, mp), _w_to_mat(p["w1"], cp),
                               _vec(p["b1"], cp), bm, m)
    y1 = bn_finalize(y1, s1, q1, _vec(p["g1"], cp), _vec(p["be1"], cp), bm, m,
                     out_dtype=MXU_DTYPE)          # bf16 activation between stages

    # ---- y2 = bn2(conv2(y1)); shortcut add + ReLU fused into the finalize ----
    y1_nhwc = y1[:m, :cout].reshape(n, ho, wo, cout)
    patches2, _, _ = im2col(y1_nhwc, 3, 1, 1)
    y2, s2, q2 = conv_bn_stats(_pad_rows(patches2, mp), _w_to_mat(p["w2"], cp),
                               _vec(p["b2"], cp), bm, m)

    if use1_1conv:
        xs = x_nhwc[:, ::strides, ::strides, :].reshape(m, cin).astype(MXU_DTYPE)
        shortcut = (_pad_rows(xs, mp), _w_to_mat(p["w3"], cp), _vec(p["b3"], cp))
        out = bn_finalize(y2, s2, q2, _vec(p["g2"], cp), _vec(p["be2"], cp), bm, m,
                          shortcut=shortcut)
    else:
        res = x_nhwc.reshape(m, cin)               # requires cin == cout, strides == 1
        res = _pad_rows(jnp.pad(res, ((0, 0), (0, cp - cin))), mp)
        out = bn_finalize(y2, s2, q2, _vec(p["g2"], cp), _vec(p["be2"], cp), bm, m,
                          residual=res)

    out_nhwc = out[:m, :cout].reshape(n, ho, wo, cout)
    return jnp.transpose(out_nhwc, (0, 3, 1, 2))   # back to NCHW


def init_residual_params(key, cin, cout, use1_1conv):
    ks = jax.random.split(key, 10)
    p = {
        "w1": 0.1 * jax.random.normal(ks[0], (cout, cin, 3, 3), jnp.float32),
        "b1": 0.1 * jax.random.normal(ks[1], (cout,), jnp.float32),
        "w2": 0.1 * jax.random.normal(ks[2], (cout, cout, 3, 3), jnp.float32),
        "b2": 0.1 * jax.random.normal(ks[3], (cout,), jnp.float32),
        "g1": 1.0 + 0.1 * jax.random.normal(ks[4], (cout,), jnp.float32),
        "be1": 0.1 * jax.random.normal(ks[5], (cout,), jnp.float32),
        "g2": 1.0 + 0.1 * jax.random.normal(ks[6], (cout,), jnp.float32),
        "be2": 0.1 * jax.random.normal(ks[7], (cout,), jnp.float32),
    }
    if use1_1conv:
        p["w3"] = 0.1 * jax.random.normal(ks[8], (cout, cin, 1, 1), jnp.float32)
        p["b3"] = 0.1 * jax.random.normal(ks[9], (cout,), jnp.float32)
    return p


# --------------------------- pure-JAX reference -------------------------------

def ref_residual(x, p, use1_1conv, strides, mxu_bf16=False):
    """f32 reference. With mxu_bf16=True, conv inputs/weights are rounded to
    bf16 first (exactly what the Pallas MXU path does), keeping a tight check."""
    cast = ((lambda a: a.astype(jnp.bfloat16).astype(jnp.float32)) if mxu_bf16
            else (lambda a: a))

    def conv(inp, w, b, stride, pad):
        y = lax.conv_general_dilated(
            cast(inp), cast(w), (stride, stride), ((pad, pad), (pad, pad)),
            dimension_numbers=("NCHW", "OIHW", "NCHW"),
            precision=lax.Precision.HIGHEST)
        return y + b.reshape(1, -1, 1, 1)

    def bn(z, g, be):   # training-mode BatchNorm2d (batch stats, biased var)
        mu = jnp.mean(z, axis=(0, 2, 3), keepdims=True)
        var = jnp.mean(jnp.square(z - mu), axis=(0, 2, 3), keepdims=True)
        return (z - mu) * lax.rsqrt(var + EPS) * g.reshape(1, -1, 1, 1) + be.reshape(1, -1, 1, 1)

    y = jax.nn.relu(bn(conv(x, p["w1"], p["b1"], strides, 1), p["g1"], p["be1"]))
    y = bn(conv(y, p["w2"], p["b2"], 1, 1), p["g2"], p["be2"])
    sc = conv(x, p["w3"], p["b3"], strides, 0) if use1_1conv else x
    return jax.nn.relu(y + sc)


# --------------------------- main ----------------------------------------------

if __name__ == "__main__":
    key = jax.random.PRNGKey(0)
    kx, kp1, kp2 = jax.random.split(key, 3)

    x = jax.random.normal(kx, (2, 4, 16, 16), jnp.float32)   # NCHW, like PyTorch

    # Case 1: identity shortcut (use1_1conv=False, strides=1), 4 -> 4 channels
    p1 = init_residual_params(kp1, 4, 4, use1_1conv=False)
    out1 = jax.block_until_ready(residual_forward(x, p1, use1_1conv=False, strides=1))
    assert out1.shape == (2, 4, 16, 16)
    ref1b = ref_residual(x, p1, False, 1, mxu_bf16=True)      # tight: same bf16 MXU rounding
    ref1f = ref_residual(x, p1, False, 1, mxu_bf16=False)     # loose: pure-f32 module math
    assert jnp.allclose(out1, ref1b, atol=5e-3, rtol=5e-3), float(jnp.max(jnp.abs(out1 - ref1b)))
    assert jnp.allclose(out1, ref1f, atol=1e-1, rtol=1e-1), float(jnp.max(jnp.abs(out1 - ref1f)))

    # Case 2: 1x1-conv shortcut, stride 2, 4 -> 8 channels
    p2 = init_residual_params(kp2, 4, 8, use1_1conv=True)
    out2 = jax.block_until_ready(residual_forward(x, p2, use1_1conv=True, strides=2))
    assert out2.shape == (2, 8, 8, 8)
    ref2b = ref_residual(x, p2, True, 2, mxu_bf16=True)
    ref2f = ref_residual(x, p2, True, 2, mxu_bf16=False)
    assert jnp.allclose(out2, ref2b, atol=5e-3, rtol=5e-3), float(jnp.max(jnp.abs(out2 - ref2b)))
    assert jnp.allclose(out2, ref2f, atol=1e-1, rtol=1e-1), float(jnp.max(jnp.abs(out2 - ref2f)))

    print("KERNEL_OK")
</pallas_src>

<mosaic_0001>
module attributes {stable_mosaic.version = 11 : i64} {
  func.func @_conv_stats_kernel(%arg0: i32, %arg1: memref<512x36xbf16, #tpu.memory_space<vmem>>, %arg2: memref<36x128xbf16, #tpu.memory_space<vmem>>, %arg3: memref<1x128xf32, #tpu.memory_space<vmem>>, %arg4: memref<512x128xf32, #tpu.memory_space<vmem>>, %arg5: memref<1x128xf32, #tpu.memory_space<vmem>>, %arg6: memref<1x128xf32, #tpu.memory_space<vmem>>) attributes {dimension_semantics = [#tpu.dimension_semantics<arbitrary>], iteration_bounds = array<i64: 1>, scalar_prefetch = 0 : i64, scratch_operands = 0 : i64, tpu.core_type = #tpu.core_type<tc>, window_params = [{transform_indices = @transform_0, window_bounds = array<i64: 512, 36>}, {pipeline_mode = #tpu.pipeline_mode<synchronous>, transform_indices = @transform_1, window_bounds = array<i64: 36, 128>}, {pipeline_mode = #tpu.pipeline_mode<synchronous>, transform_indices = @transform_2, window_bounds = array<i64: 1, 128>}, {transform_indices = @transform_3, window_bounds = array<i64: 512, 128>}, {pipeline_mode = #tpu.pipeline_mode<synchronous>, transform_indices = @transform_4, window_bounds = array<i64: 1, 128>}, {pipeline_mode = #tpu.pipeline_mode<synchronous>, transform_indices = @transform_5, window_bounds = array<i64: 1, 128>}]} {
    %c0_i32 = arith.constant 0 : i32
    %0 = arith.cmpi eq, %arg0, %c0_i32 : i32
    %1 = arith.extui %0 : i1 to i32
    %c0_i32_0 = arith.constant 0 : i32
    %2 = arith.cmpi ne, %1, %c0_i32_0 : i32
    scf.if %2 {
      %cst_21 = arith.constant 0.000000e+00 : f32
      %32 = vector.broadcast %cst_21 : f32 to vector<1x128xf32>
      %c0_22 = arith.constant 0 : index
      %c0_23 = arith.constant 0 : index
      %33 = vector.load %arg5[%c0_22, %c0_23] : memref<1x128xf32, #tpu.memory_space<vmem>>, vector<1x128xf32>
      tpu.vector_store %arg5[%c0_22, %c0_23], %32 {strides = array<i32>} : memref<1x128xf32, #tpu.memory_space<vmem>>, vector<1x128xf32>,
      %cst_24 = arith.constant 0.000000e+00 : f32
      %34 = vector.broadcast %cst_24 : f32 to vector<1x128xf32>
      %c0_25 = arith.constant 0 : index
      %c0_26 = arith.constant 0 : index
      %35 = vector.load %arg6[%c0_25, %c0_26] : memref<1x128xf32, #tpu.memory_space<vmem>>, vector<1x128xf32>
      tpu.vector_store %arg6[%c0_25, %c0_26], %34 {strides = array<i32>} : memref<1x128xf32, #tpu.memory_space<vmem>>, vector<1x128xf32>,
    } else {
    }
    %c0 = arith.constant 0 : index
    %c0_1 = arith.constant 0 : index
    %3 = vector.load %arg1[%c0, %c0_1] : memref<512x36xbf16, #tpu.memory_space<vmem>>, vector<512x36xbf16>
    %c0_2 = arith.constant 0 : index
    %c0_3 = arith.constant 0 : index
    %4 = vector.load %arg2[%c0_2, %c0_3] : memref<36x128xbf16, #tpu.memory_space<vmem>>, vector<36x128xbf16>
    %cst = arith.constant dense<0.000000e+00> : vector<512x128xf32>
    %5 = tpu.matmul %3, %4, %cst {dimension_numbers = #tpu.dot_dimension_numbers<[1], [0], [0], [1], [0, 0, 1, 1], [], []>} : vector<512x36xbf16>, vector<36x128xbf16>, vector<512x128xf32> -> vector<512x128xf32>
    %c0_4 = arith.constant 0 : index
    %c0_5 = arith.constant 0 : index
    %6 = vector.load %arg3[%c0_4, %c0_5] : memref<1x128xf32, #tpu.memory_space<vmem>>, vector<1x128xf32>
    %7 = vector.broadcast %6 : vector<1x128xf32> to vector<512x128xf32>
    %8 = arith.addf %5, %7 : vector<512x128xf32>
    %c0_6 = arith.constant 0 : index
    %c0_7 = arith.constant 0 : index
    %9 = vector.load %arg4[%c0_6, %c0_7] : memref<512x128xf32, #tpu.memory_space<vmem>>, vector<512x128xf32>
    tpu.vector_store %arg4[%c0_6, %c0_7], %8 {strides = array<i32>} : memref<512x128xf32, #tpu.memory_space<vmem>>, vector<512x128xf32>,
    %c512_i32 = arith.constant 512 : i32
    %10 = arith.muli %arg0, %c512_i32 : i32
    %11 = tpu.iota {dimensions = array<i32: 0>} : vector<512x1xi32>
    %12 = vector.broadcast %10 : i32 to vector<512x1xi32>
    %13 = arith.addi %12, %11 : vector<512x1xi32>
    %c512_i32_8 = arith.constant 512 : i32
    %14 = vector.broadcast %c512_i32_8 : i32 to vector<512x1xi32>
    %15 = arith.cmpi slt, %13, %14 : vector<512x1xi32>
    %cst_9 = arith.constant 1.000000e+00 : f32
    %cst_10 = arith.constant 0.000000e+00 : f32
    %16 = vector.broadcast %cst_9 : f32 to vector<512x1xf32>
    %17 = vector.broadcast %cst_10 : f32 to vector<512x1xf32>
    %18 = arith.select %15, %16, %17 : vector<512x1xi1>, vector<512x1xf32>
    %19 = vector.broadcast %18 : vector<512x1xf32> to vector<512x128xf32>
    %20 = arith.mulf %8, %19 : vector<512x128xf32>
    %c0_11 = arith.constant 0 : index
    %c0_12 = arith.constant 0 : index
    %21 = vector.load %arg5[%c0_11, %c0_12] : memref<1x128xf32, #tpu.memory_space<vmem>>, vector<1x128xf32>
    %cst_13 = arith.constant dense<0.000000e+00> : vector<128xf32>
    %22 = vector.multi_reduction <add>, %20, %cst_13 [0] : vector<512x128xf32> to vector<128xf32>
    %23 = vector.shape_cast %22 : vector<128xf32> to vector<1x128xf32>
    %24 = arith.addf %21, %23 : vector<1x128xf32>
    %c0_14 = arith.constant 0 : index
    %c0_15 = arith.constant 0 : index
    %25 = vector.load %arg5[%c0_14, %c0_15] : memref<1x128xf32, #tpu.memory_space<vmem>>, vector<1x128xf32>
    tpu.vector_store %arg5[%c0_14, %c0_15], %24 {strides = array<i32>} : memref<1x128xf32, #tpu.memory_space<vmem>>, vector<1x128xf32>,
    %c0_16 = arith.constant 0 : index
    %c0_17 = arith.constant 0 : index
    %26 = vector.load %arg6[%c0_16, %c0_17] : memref<1x128xf32, #tpu.memory_space<vmem>>, vector<1x128xf32>
    %27 = arith.mulf %20, %8 : vector<512x128xf32>
    %cst_18 = arith.constant dense<0.000000e+00> : vector<128xf32>
    %28 = vector.multi_reduction <add>, %27, %cst_18 [0] : vector<512x128xf32> to vector<128xf32>
    %29 = vector.shape_cast %28 : vector<128xf32> to vector<1x128xf32>
    %30 = arith.addf %26, %29 : vector<1x128xf32>
    %c0_19 = arith.constant 0 : index
    %c0_20 = arith.constant 0 : index
    %31 = vector.load %arg6[%c0_19, %c0_20] : memref<1x128xf32, #tpu.memory_space<vmem>>, vector<1x128xf32>
    tpu.vector_store %arg6[%c0_19, %c0_20], %30 {strides = array<i32>} : memref<1x128xf32, #tpu.memory_space<vmem>>, vector<1x128xf32>,
    return
  }
  func.func @transform_0(%arg0: i32) -> (i32, i32) {
    %c0_i32 = arith.constant 0 : i32
    %c0_i32_0 = arith.constant 0 : i32
    return %arg0, %c0_i32 : i32, i32
  }
  func.func @transform_1(%arg0: i32) -> (i32, i32) {
    %c0_i32 = arith.constant 0 : i32
    %c0_i32_0 = arith.constant 0 : i32
    %c0_i32_1 = arith.constant 0 : i32
    return %c0_i32, %c0_i32_0 : i32, i32
  }
  func.func @transform_2(%arg0: i32) -> (i32, i32) {
    %c0_i32 = arith.constant 0 : i32
    %c0_i32_0 = arith.constant 0 : i32
    %c0_i32_1 = arith.constant 0 : i32
    return %c0_i32, %c0_i32_0 : i32, i32
  }
  func.func @transform_3(%arg0: i32) -> (i32, i32) {
    %c0_i32 = arith.constant 0 : i32
    %c0_i32_0 = arith.constant 0 : i32
    return %arg0, %c0_i32 : i32, i32
  }
  func.func @transform_4(%arg0: i32) -> (i32, i32) {
    %c0_i32 = arith.constant 0 : i32
    %c0_i32_0 = arith.constant 0 : i32
    %c0_i32_1 = arith.constant 0 : i32
    return %c0_i32, %c0_i32_0 : i32, i32
  }
  func.func @transform_5(%arg0: i32) -> (i32, i32) {
    %c0_i32 = arith.constant 0 : i32
    %c0_i32_0 = arith.constant 0 : i32
    %c0_i32_1 = arith.constant 0 : i32
    return %c0_i32, %c0_i32_0 : i32, i32
  }
}

</mosaic_0001>

<llo_original>
// kernel: tpu_custom_call.1
$region0: #{tpu_custom_call.1}
  #allocation0 [shape = 'u32[]', space=smem, size = 0x4, offset = 0x4, fixed_abs, tag = 'smem constant byte address 0x4 - core index']
  #allocation1 [shape = 'u32[144,128]{1,0:T(1,128)}', space=vmem, size = 0x12000, scoped, tag = 'internal scratch']
  %s0 = inlined_call_operand.vmem [shape: bf16[512,36], index: 0, kind: input, shape index: {}]
  %s1 = inlined_call_operand.vmem [shape: bf16[36,128], index: 1, kind: input, shape index: {}]
  %s2 = inlined_call_operand.vmem [shape: f32[1,128], index: 2, kind: input, shape index: {}]
  %s3 = inlined_call_operand.hbm [shape: f32[512,128], index: 3, kind: output, shape index: {0}]
  %s4 = inlined_call_operand.hbm [shape: f32[1,128], index: 4, kind: output, shape index: {1}]
  %s5 = inlined_call_operand.hbm [shape: f32[1,128], index: 5, kind: output, shape index: {2}]
  %6 = xla_tuple %s3, %s4, %s5
  %s7 = sld [smem:[#allocation0]]
  $region42: #{tpu_custom_call.1} parent=0
    _
  %s9 = ssub.s32 1, %s7
  %s10 = scalar_select 0, %s9, %s7
  $region1: #{tpu_custom_call.1} parent=0
    #allocation2 [shape = 'u8[262144]{0}', space=vmem, size = 0x40000, scoped, tag = 'output window, operand 0, single buffered']
    #allocation3 [shape = 's32[1]{0}', space=sflag, size = 0x4, scoped, tag = 'scoped memory for tpu_custom_call.1']
    #allocation4 [shape = 'u8[512]{0}', space=vmem, size = 0x400, scoped, tag = 'output window, operand 1, single buffered']
    #allocation5 [shape = 's32[1]{0}', space=sflag, size = 0x4, scoped, tag = 'scoped memory for tpu_custom_call.1']
    #allocation6 [shape = 'u8[512]{0}', space=vmem, size = 0x400, scoped, tag = 'output window, operand 2, single buffered']
    %11 = vsyncpa [#allocation3], 0
    %12 = vsyncpa [#allocation5], 0
    // Predicated region
    $region2: #{tpu_custom_call.1} parent=1 // pred_check
      _
    $region3: #{tpu_custom_call.1} parent=1 // pred_check_branch
      %14 = sbr.rel (0) target = $region5
    $region4: #{tpu_custom_call.1} parent=1 // pred_region
      _
    $region5: #{tpu_custom_call.1} parent=1 // pred_fallthru
      _
    // Predicated region
    $region6: #{tpu_custom_call.1} parent=1 // pred_check
      _
    $region7: #{tpu_custom_call.1} parent=1 // pred_check_branch
      %16 = sbr.rel (0) target = $region9
    $region8: #{tpu_custom_call.1} parent=1 // pred_region
      _
    $region9: #{tpu_custom_call.1} parent=1 // pred_fallthru
      _
    // Predicated region
    $region10: #{tpu_custom_call.1} parent=1 // pred_check
      _
    $region11: #{tpu_custom_call.1} parent=1 // pred_check_branch
      %18 = sbr.rel (0) target = $region13
    $region12: #{tpu_custom_call.1} parent=1 // pred_region
      _
    $region13: #{tpu_custom_call.1} parent=1 // pred_fallthru
      _
    %p20 = scmp.eq.s32.totalorder 0, 0
    // Predicated region
    $region14: #{tpu_custom_call.1} parent=1 // pred_check
      %p21 = pneg %p20
    $region15: #{tpu_custom_call.1} parent=1 // pred_check_branch
      %23 = sbr.rel (%p21) target = $region17
    $region16: #{tpu_custom_call.1} parent=1 // pred_region
      %24 = vst [vmem:[#allocation4] sm:$0x1] 0.0
      %25 = vst [vmem:[#allocation6] sm:$0x1] 0.0
    $region17: #{tpu_custom_call.1} parent=1 // pred_fallthru
      _
    %v26 = vld [vmem:[%s0] sm:$0xf]
    %v27 = vld [vmem:[%s0 + $0x4] sm:$0xf]
    %v28 = vld [vmem:[%s0 + $0x8] sm:$0xf]
    %v29 = vld [vmem:[%s0 + $0xc] sm:$0xf]
    %v30 = vld [vmem:[%s0 + $0x10] sm:$0xf]
    %v31 = vld [vmem:[%s0 + $0x14] sm:$0xf]
    %v32 = vld [vmem:[%s0 + $0x18] sm:$0xf]
    %v33 = vld [vmem:[%s0 + $0x1c] sm:$0xf]
    %v34 = vld [vmem:[%s0 + $0x20] sm:$0xf]
    %v35 = vld [vmem:[%s0 + $0x24] sm:$0xf]
    %v36 = vld [vmem:[%s0 + $0x28] sm:$0xf]
    %v37 = vld [vmem:[%s0 + $0x2c] sm:$0xf]
    %v38 = vld [vmem:[%s0 + $0x30] sm:$0xf]
    %v39 = vld [vmem:[%s0 + $0x34] sm:$0xf]
    %v40 = vld [vmem:[%s0 + $0x38] sm:$0xf]
    %v41 = vld [vmem:[%s0 + $0x3c] sm:$0xf]
    %v42 = vld [vmem:[%s0 + $0x40] sm:$0xf]
    %v43 = vld [vmem:[%s0 + $0x44] sm:$0xf]
    %v44 = vld [vmem:[%s0 + $0x48] sm:$0xf]
    %v45 = vld [vmem:[%s0 + $0x4c] sm:$0xf]
    %v46 = vld [vmem:[%s0 + $0x50] sm:$0xf]
    %v47 = vld [vmem:[%s0 + $0x54] sm:$0xf]
    %v48 = vld [vmem:[%s0 + $0x58] sm:$0xf]
    %v49 = vld [vmem:[%s0 + $0x5c] sm:$0xf]
    %v50 = vld [vmem:[%s0 + $0x60] sm:$0xf]
    %v51 = vld [vmem:[%s0 + $0x64] sm:$0xf]
    %v52 = vld [vmem:[%s0 + $0x68] sm:$0xf]
    %v53 = vld [vmem:[%s0 + $0x6c] sm:$0xf]
    %v54 = vld [vmem:[%s0 + $0x70] sm:$0xf]
    %v55 = vld [vmem:[%s0 + $0x74] sm:$0xf]
    %v56 = vld [vmem:[%s0 + $0x78] sm:$0xf]
    %v57 = vld [vmem:[%s0 + $0x7c] sm:$0xf]
    %v58 = vld [vmem:[%s0 + $0x80] sm:$0xf]
    %v59 = vld [vmem:[%s0 + $0x84] sm:$0xf]
    %v60 = vld [vmem:[%s0 + $0x88] sm:$0xf]
    %v61 = vld [vmem:[%s0 + $0x8c] sm:$0xf]
    %v62 = vld [vmem:[%s0 + $0x90] sm:$0xf]
    %v63 = vld [vmem:[%s0 + $0x94] sm:$0xf]
    %v64 = vld [vmem:[%s0 + $0x98] sm:$0xf]
    %v65 = vld [vmem:[%s0 + $0x9c] sm:$0xf]
    %v66 = vld [vmem:[%s0 + $0xa0] sm:$0xf]
    %v67 = vld [vmem:[%s0 + $0xa4] sm:$0xf]
    %v68 = vld [vmem:[%s0 + $0xa8] sm:$0xf]
    %v69 = vld [vmem:[%s0 + $0xac] sm:$0xf]
    %v70 = vld [vmem:[%s0 + $0xb0] sm:$0xf]
    %v71 = vld [vmem:[%s0 + $0xb4] sm:$0xf]
    %v72 = vld [vmem:[%s0 + $0xb8] sm:$0xf]
    %v73 = vld [vmem:[%s0 + $0xbc] sm:$0xf]
    %v74 = vld [vmem:[%s0 + $0xc0] sm:$0xf]
    %v75 = vld [vmem:[%s0 + $0xc4] sm:$0xf]
    %v76 = vld [vmem:[%s0 + $0xc8] sm:$0xf]
    %v77 = vld [vmem:[%s0 + $0xcc] sm:$0xf]
    %v78 = vld [vmem:[%s0 + $0xd0] sm:$0xf]
    %v79 = vld [vmem:[%s0 + $0xd4] sm:$0xf]
    %v80 = vld [vmem:[%s0 + $0xd8] sm:$0xf]
    %v81 = vld [vmem:[%s0 + $0xdc] sm:$0xf]
    %v82 = vld [vmem:[%s0 + $0xe0] sm:$0xf]
    %v83 = vld [vmem:[%s0 + $0xe4] sm:$0xf]
    %v84 = vld [vmem:[%s0 + $0xe8] sm:$0xf]
    %v85 = vld [vmem:[%s0 + $0xec] sm:$0xf]
    %v86 = vld [vmem:[%s0 + $0xf0] sm:$0xf]
    %v87 = vld [vmem:[%s0 + $0xf4] sm:$0xf]
    %v88 = vld [vmem:[%s0 + $0xf8] sm:$0xf]
    %v89 = vld [vmem:[%s0 + $0xfc] sm:$0xf]
    %v90 = vld [vmem:[%s1] sm:$0xf]
    %v91 = vld [vmem:[%s1 + $0x4] sm:$0xf]
    %v92 = vld [vmem:[%s1 + $0x8] sm:$0xf]
    %v93 = vld [vmem:[%s1 + $0xc] sm:$0xf]
    %v94 = vld [vmem:[%s1 + $0x10] sm:$0x3]
    %v95 = vld [vmem:[%s2] sm:$0x1]
    %v97 = vlaneseq
    %v98 = vshrl.u32 %v97, 7
    %v99 = vsub.s32 0, %v98
    %v100 = vrot.slane %v95, %v99
    %v166 = vunpack.c.l.b16 %v26
    %v167 = vunpack.c.l.b16 %v27
    %v168 = vunpack.c.l.b16 %v28
    %v169 = vunpack.c.l.b16 %v29
    %v170 = vunpack.c.l.b16 %v30
    %v171 = vunpack.c.l.b16 %v31
    %v172 = vunpack.c.l.b16 %v32
    %v173 = vunpack.c.l.b16 %v33
    %v174 = vunpack.c.l.b16 %v34
    %v175 = vunpack.c.l.b16 %v35
    %v176 = vunpack.c.l.b16 %v36
    %v177 = vunpack.c.l.b16 %v37
    %v178 = vunpack.c.l.b16 %v38
    %v179 = vunpack.c.l.b16 %v39
    %v180 = vunpack.c.l.b16 %v40
    %v181 = vunpack.c.l.b16 %v41
    %v182 = vunpack.c.l.b16 %v42
    %v183 = vunpack.c.l.b16 %v43
    %v184 = vunpack.c.l.b16 %v44
    %v185 = vunpack.c.l.b16 %v45
    %v186 = vunpack.c.l.b16 %v46
    %v187 = vunpack.c.l.b16 %v47
    %v188 = vunpack.c.l.b16 %v48
    %v189 = vunpack.c.l.b16 %v49
    %v190 = vunpack.c.l.b16 %v50
    %v191 = vunpack.c.l.b16 %v51
    %v192 = vunpack.c.l.b16 %v52
    %v193 = vunpack.c.l.b16 %v53
    %v194 = vunpack.c.l.b16 %v54
    %v195 = vunpack.c.l.b16 %v55
    %v196 = vunpack.c.l.b16 %v56
    %v197 = vunpack.c.l.b16 %v57
    %v198 = vunpack.c.l.b16 %v58
    %v199 = vunpack.c.l.b16 %v59
    %v200 = vunpack.c.l.b16 %v60
    %v201 = vunpack.c.l.b16 %v61
    %v202 = vunpack.c.l.b16 %v62
    %v203 = vunpack.c.l.b16 %v63
    %v204 = vunpack.c.l.b16 %v64
    %v205 = vunpack.c.l.b16 %v65
    %v206 = vunpack.c.l.b16 %v66
    %v207 = vunpack.c.l.b16 %v67
    %v208 = vunpack.c.l.b16 %v68
    %v209 = vunpack.c.l.b16 %v69
    %v210 = vunpack.c.l.b16 %v70
    %v211 = vunpack.c.l.b16 %v71
    %v212 = vunpack.c.l.b16 %v72
    %v213 = vunpack.c.l.b16 %v73
    %v214 = vunpack.c.l.b16 %v74
    %v215 = vunpack.c.l.b16 %v75
    %v216 = vunpack.c.l.b16 %v76
    %v217 = vunpack.c.l.b16 %v77
    %v218 = vunpack.c.l.b16 %v78
    %v219 = vunpack.c.l.b16 %v79
    %v220 = vunpack.c.l.b16 %v80
    %v221 = vunpack.c.l.b16 %v81
    %v222 = vunpack.c.l.b16 %v82
    %v223 = vunpack.c.l.b16 %v83
    %v224 = vunpack.c.l.b16 %v84
    %v225 = vunpack.c.l.b16 %v85
    %v226 = vunpack.c.l.b16 %v86
    %v227 = vunpack.c.l.b16 %v87
    %v228 = vunpack.c.l.b16 %v88
    %v229 = vunpack.c.l.b16 %v89
    %v230 = vpack.c.b16 %v167, %v166
    %v231 = vpack.c.b16 %v169, %v168
    %v232 = vpack.c.b16 %v171, %v170
    %v233 = vpack.c.b16 %v173, %v172
    %v234 = vpack.c.b16 %v175, %v174
    %v235 = vpack.c.b16 %v177, %v176
    %v236 = vpack.c.b16 %v179, %v178
    %v237 = vpack.c.b16 %v181, %v180
    %v238 = vpack.c.b16 %v183, %v182
    %v239 = vpack.c.b16 %v185, %v184
    %v240 = vpack.c.b16 %v187, %v186
    %v241 = vpack.c.b16 %v189, %v188
    %v242 = vpack.c.b16 %v191, %v190
    %v243 = vpack.c.b16 %v193, %v192
    %v244 = vpack.c.b16 %v195, %v194
    %v245 = vpack.c.b16 %v197, %v196
    %v246 = vpack.c.b16 %v199, %v198
    %v247 = vpack.c.b16 %v201, %v200
    %v248 = vpack.c.b16 %v203, %v202
    %v249 = vpack.c.b16 %v205, %v204
    %v250 = vpack.c.b16 %v207, %v206
    %v251 = vpack.c.b16 %v209, %v208
    %v252 = vpack.c.b16 %v211, %v210
    %v253 = vpack.c.b16 %v213, %v212
    %v254 = vpack.c.b16 %v215, %v214
    %v255 = vpack.c.b16 %v217, %v216
    %v256 = vpack.c.b16 %v219, %v218
    %v257 = vpack.c.b16 %v221, %v220
    %v258 = vpack.c.b16 %v223, %v222
    %v259 = vpack.c.b16 %v225, %v224
    %v260 = vpack.c.b16 %v227, %v226
    %v261 = vpack.c.b16 %v229, %v228
    %v267 = vunpack.c.l.b16 %v90
    %v268 = vunpack.c.l.b16 %v91
    %v269 = vunpack.c.l.b16 %v92
    %v270 = vunpack.c.l.b16 %v93
    %v271 = vunpack.c.l.b16 %v94
    %v272 = vpack.c.b16 %v268, %v267
    %v273 = vpack.c.b16 %v270, %v269
    %v274 = vpack.c.b16 %v271, %v271
    %vm277 = vcmask 293888
    %v279 = vsel %vm277, %v230, 0
    %v282 = vsel %vm277, %v231, 0
    %v285 = vsel %vm277, %v232, 0
    %v288 = vsel %vm277, %v233, 0
    %v291 = vsel %vm277, %v234, 0
    %v294 = vsel %vm277, %v235, 0
    %v297 = vsel %vm277, %v236, 0
    %v300 = vsel %vm277, %v237, 0
    %v303 = vsel %vm277, %v238, 0
    %v306 = vsel %vm277, %v239, 0
    %v309 = vsel %vm277, %v240, 0
    %v312 = vsel %vm277, %v241, 0
    %v315 = vsel %vm277, %v242, 0
    %v318 = vsel %vm277, %v243, 0
    %v321 = vsel %vm277, %v244, 0
    %v324 = vsel %vm277, %v245, 0
    %v327 = vsel %vm277, %v246, 0
    %v330 = vsel %vm277, %v247, 0
    %v333 = vsel %vm277, %v248, 0
    %v336 = vsel %vm277, %v249, 0
    %v339 = vsel %vm277, %v250, 0
    %v342 = vsel %vm277, %v251, 0
    %v345 = vsel %vm277, %v252, 0
    %v348 = vsel %vm277, %v253, 0
    %v351 = vsel %vm277, %v254, 0
    %v354 = vsel %vm277, %v255, 0
    %v357 = vsel %vm277, %v256, 0
    %v360 = vsel %vm277, %v257, 0
    %v363 = vsel %vm277, %v258, 0
    %v366 = vsel %vm277, %v259, 0
    %v369 = vsel %vm277, %v260, 0
    %v372 = vsel %vm277, %v261, 0
    %vm374 = vcmask 1041408
    %v376 = vsel %vm374, %v274, 0
    %378 = vmatprep.subr.bf16.mxu0 0
    %379 = vmatpush1.bf16.msra.mxu0 %v272
    %380 = vmatprep.subr.bf16.mxu0 0
    %381 = vmatpush1.bf16.msra.mxu0 %v273
    %382 = vmatprep.subr.bf16.mxu0 0
    %383 = vmatpush1.bf16.msra.mxu0 %v376
    %384 = vmatprep.subr.bf16.mxu0 0
    %385 = vmatpush1.bf16.msra.mxu0 0
    %386 = vmatprep.subr.bf16.mxu0 0
    %387 = vmatpush1.bf16.msra.mxu0 0
    %388 = vmatprep.subr.bf16.mxu0 0
    %389 = vmatpush1.bf16.msra.mxu0 0
    %390 = vmatprep.subr.bf16.mxu0 0
    %391 = vmatpush1.bf16.msra.mxu0 0
    %392 = vmatprep.subr.bf16.mxu0 0
    %393 = vmatpush1.bf16.msra.mxu0 0
    %394 = vmatprep.subr.bf16.mxu0 0
    %395 = vmatpush1.bf16.msra.mxu0 0
    %396 = vmatprep.subr.bf16.mxu0 0
    %397 = vmatpush1.bf16.msra.mxu0 0
    %398 = vmatprep.subr.bf16.mxu0 0
    %399 = vmatpush1.bf16.msra.mxu0 0
    %400 = vmatprep.subr.bf16.mxu0 0
    %401 = vmatpush1.bf16.msra.mxu0 0
    %402 = vmatprep.subr.bf16.mxu0 0
    %403 = vmatpush1.bf16.msra.mxu0 0
    %404 = vmatprep.subr.bf16.mxu0 0
    %405 = vmatpush1.bf16.msra.mxu0 0
    %406 = vmatprep.subr.bf16.mxu0 0
    %407 = vmatpush1.bf16.msra.mxu0 0
    %408 = vmatprep.subr.bf16.mxu0 0
    %409 = vmatpush1.bf16.msra.mxu0 0
    %410 = vmatprep.mubr.bf16.mxu0 0
    %411 = vmatmul.mubr.bf16.gmra.mrb[0].mxu0 %v279
    %v412 = vpop.f32.mrb[0].mxu0
    %v413 = vadd.f32 %v100, %v412
    %v414 = vpop.f32.mrb[0].mxu0
    %v415 = vpop.f32.mrb[0].mxu0
    %v416 = vadd.f32 %v100, %v415
    %v417 = vpop.f32.mrb[0].mxu0
    %418 = vmatprep.mubr.bf16.mxu0 0
    %419 = vmatmul.mubr.bf16.gmra.mrb[0].mxu0 %v282
    %v420 = vpop.f32.mrb[0].mxu0
    %v421 = vadd.f32 %v100, %v420
    %v422 = vpop.f32.mrb[0].mxu0
    %v423 = vpop.f32.mrb[0].mxu0
    %v424 = vadd.f32 %v100, %v423
    %v425 = vpop.f32.mrb[0].mxu0
    %426 = vmatprep.mubr.bf16.mxu0 0
    %427 = vmatmul.mubr.bf16.gmra.mrb[0].mxu0 %v285
    %v428 = vpop.f32.mrb[0].mxu0
    %v429 = vadd.f32 %v100, %v428
    %v430 = vpop.f32.mrb[0].mxu0
    %v431 = vpop.f32.mrb[0].mxu0
    %v432 = vadd.f32 %v100, %v431
    %v433 = vpop.f32.mrb[0].mxu0
    %434 = vmatprep.mubr.bf16.mxu0 0
    %435 = vmatmul.mubr.bf16.gmra.mrb[0].mxu0 %v288
    %v436 = vpop.f32.mrb[0].mxu0
    %v437 = vadd.f32 %v100, %v436
    %v438 = vpop.f32.mrb[0].mxu0
    %v439 = vpop.f32.mrb[0].mxu0
    %v440 = vadd.f32 %v100, %v439
    %v441 = vpop.f32.mrb[0].mxu0
    %442 = vmatprep.mubr.bf16.mxu0 0
    %443 = vmatmul.mubr.bf16.gmra.mrb[0].mxu0 %v291
    %v444 = vpop.f32.mrb[0].mxu0
    %v445 = vadd.f32 %v100, %v444
    %v446 = vpop.f32.mrb[0].mxu0
    %v447 = vpop.f32.mrb[0].mxu0
    %v448 = vadd.f32 %v100, %v447
    %v449 = vpop.f32.mrb[0].mxu0
    %450 = vmatprep.mubr.bf16.mxu0 0
    %451 = vmatmul.mubr.bf16.gmra.mrb[0].mxu0 %v294
    %v452 = vpop.f32.mrb[0].mxu0
    %v453 = vadd.f32 %v100, %v452
    %v454 = vpop.f32.mrb[0].mxu0
    %v455 = vpop.f32.mrb[0].mxu0
    %v456 = vadd.f32 %v100, %v455
    %v457 = vpop.f32.mrb[0].mxu0
    %458 = vmatprep.mubr.bf16.mxu0 0
    %459 = vmatmul.mubr.bf16.gmra.mrb[0].mxu0 %v297
    %v460 = vpop.f32.mrb[0].mxu0
    %v461 = vadd.f32 %v100, %v460
    %v462 = vpop.f32.mrb[0].mxu0
    %v463 = vpop.f32.mrb[0].mxu0
    %v464 = vadd.f32 %v100, %v463
    %v465 = vpop.f32.mrb[0].mxu0
    %466 = vmatprep.mubr.bf16.mxu0 0
    %467 = vmatmul.mubr.bf16.gmra.mrb[0].mxu0 %v300
    %v468 = vpop.f32.mrb[0].mxu0
    %v469 = vadd.f32 %v100, %v468
    %v470 = vpop.f32.mrb[0].mxu0
    %v471 = vpop.f32.mrb[0].mxu0
    %v472 = vadd.f32 %v100, %v471
    %v473 = vpop.f32.mrb[0].mxu0
    %474 = vmatprep.mubr.bf16.mxu0 0
    %475 = vmatmul.mubr.bf16.gmra.mrb[0].mxu0 %v303
    %v476 = vpop.f32.mrb[0].mxu0
    %v477 = vadd.f32 %v100, %v476
    %v478 = vpop.f32.mrb[0].mxu0
    %v479 = vpop.f32.mrb[0].mxu0
    %v480 = vadd.f32 %v100, %v479
    %v481 = vpop.f32.mrb[0].mxu0
    %482 = vmatprep.mubr.bf16.mxu0 0
    %483 = vmatmul.mubr.bf16.gmra.mrb[0].mxu0 %v306
    %v484 = vpop.f32.mrb[0].mxu0
    %v485 = vadd.f32 %v100, %v484
    %v486 = vpop.f32.mrb[0].mxu0
    %v487 = vpop.f32.mrb[0].mxu0
    %v488 = vadd.f32 %v100, %v487
    %v489 = vpop.f32.mrb[0].mxu0
    %490 = vmatprep.mubr.bf16.mxu0 0
    %491 = vmatmul.mubr.bf16.gmra.mrb[0].mxu0 %v309
    %v492 = vpop.f32.mrb[0].mxu0
    %v493 = vadd.f32 %v100, %v492
    %v494 = vpop.f32.mrb[0].mxu0
    %v495 = vpop.f32.mrb[0].mxu0
    %v496 = vadd.f32 %v100, %v495
    %v497 = vpop.f32.mrb[0].mxu0
    %498 = vmatprep.mubr.bf16.mxu0 0
    %499 = vmatmul.mubr.bf16.gmra.mrb[0].mxu0 %v312
    %v500 = vpop.f32.mrb[0].mxu0
    %v501 = vadd.f32 %v100, %v500
    %v502 = vpop.f32.mrb[0].mxu0
    %v503 = vpop.f32.mrb[0].mxu0
    %v504 = vadd.f32 %v100, %v503
    %v505 = vpop.f32.mrb[0].mxu0
    %506 = vmatprep.mubr.bf16.mxu0 0
    %507 = vmatmul.mubr.bf16.gmra.mrb[0].mxu0 %v315
    %v508 = vpop.f32.mrb[0].mxu0
    %v509 = vadd.f32 %v100, %v508
    %v510 = vpop.f32.mrb[0].mxu0
    %v511 = vpop.f32.mrb[0].mxu0
    %v512 = vadd.f32 %v100, %v511
    %v513 = vpop.f32.mrb[0].mxu0
    %514 = vmatprep.mubr.bf16.mxu0 0
    %515 = vmatmul.mubr.bf16.gmra.mrb[0].mxu0 %v318
    %v516 = vpop.f32.mrb[0].mxu0
    %v517 = vadd.f32 %v100, %v516
    %v518 = vpop.f32.mrb[0].mxu0
    %v519 = vpop.f32.mrb[0].mxu0
    %v520 = vadd.f32 %v100, %v519
    %v521 = vpop.f32.mrb[0].mxu0
    %522 = vmatprep.mubr.bf16.mxu0 0
    %523 = vmatmul.mubr.bf16.gmra.mrb[0].mxu0 %v321
    %v524 = vpop.f32.mrb[0].mxu0
    %v525 = vadd.f32 %v100, %v524
    %v526 = vpop.f32.mrb[0].mxu0
    %v527 = vpop.f32.mrb[0].mxu0
    %v528 = vadd.f32 %v100, %v527
    %v529 = vpop.f32.mrb[0].mxu0
    %530 = vmatprep.mubr.bf16.mxu0 0
    %531 = vmatmul.mubr.bf16.gmra.mrb[0].mxu0 %v324
    %v532 = vpop.f32.mrb[0].mxu0
    %v533 = vadd.f32 %v100, %v532
    %v534 = vpop.f32.mrb[0].mxu0
    %v535 = vpop.f32.mrb[0].mxu0
    %v536 = vadd.f32 %v100, %v535
    %v537 = vpop.f32.mrb[0].mxu0
    %538 = vmatprep.mubr.bf16.mxu0 0
    %539 = vmatmul.mubr.bf16.gmra.mrb[0].mxu0 %v327
    %v540 = vpop.f32.mrb[0].mxu0
    %v541 = vadd.f32 %v100, %v540
    %v542 = vpop.f32.mrb[0].mxu0
    %v543 = vpop.f32.mrb[0].mxu0
    %v544 = vadd.f32 %v100, %v543
    %v545 = vpop.f32.mrb[0].mxu0
    %546 = vmatprep.mubr.bf16.mxu0 0
    %547 = vmatmul.mubr.bf16.gmra.mrb[0].mxu0 %v330
    %v548 = vpop.f32.mrb[0].mxu0
    %v549 = vadd.f32 %v100, %v548
    %v550 = vpop.f32.mrb[0].mxu0
    %v551 = vpop.f32.mrb[0].mxu0
    %v552 = vadd.f32 %v100, %v551
    %v553 = vpop.f32.mrb[0].mxu0
    %554 = vmatprep.mubr.bf16.mxu0 0
    %555 = vmatmul.mubr.bf16.gmra.mrb[0].mxu0 %v333
    %v556 = vpop.f32.mrb[0].mxu0
    %v557 = vadd.f32 %v100, %v556
    %v558 = vpop.f32.mrb[0].mxu0
    %v559 = vpop.f32.mrb[0].mxu0
    %v560 = vadd.f32 %v100, %v559
    %v561 = vpop.f32.mrb[0].mxu0
    %562 = vmatprep.mubr.bf16.mxu0 0
    %563 = vmatmul.mubr.bf16.gmra.mrb[0].mxu0 %v336
    %v564 = vpop.f32.mrb[0].mxu0
    %v565 = vadd.f32 %v100, %v564
    %v566 = vpop.f32.mrb[0].mxu0
    %v567 = vpop.f32.mrb[0].mxu0
    %v568 = vadd.f32 %v100, %v567
    %v569 = vpop.f32.mrb[0].mxu0
    %570 = vmatprep.mubr.bf16.mxu0 0
    %571 = vmatmul.mubr.bf16.gmra.mrb[0].mxu0 %v339
    %v572 = vpop.f32.mrb[0].mxu0
    %v573 = vadd.f32 %v100, %v572
    %v574 = vpop.f32.mrb[0].mxu0
    %v575 = vpop.f32.mrb[0].mxu0
    %v576 = vadd.f32 %v100, %v575
    %v577 = vpop.f32.mrb[0].mxu0
    %578 = vmatprep.mubr.bf16.mxu0 0
    %579 = vmatmul.mubr.bf16.gmra.mrb[0].mxu0 %v342
    %v580 = vpop.f32.mrb[0].mxu0
    %v581 = vadd.f32 %v100, %v580
    %v582 = vpop.f32.mrb[0].mxu0
    %v583 = vpop.f32.mrb[0].mxu0
    %v584 = vadd.f32 %v100, %v583
    %v585 = vpop.f32.mrb[0].mxu0
    %586 = vmatprep.mubr.bf16.mxu0 0
    %587 = vmatmul.mubr.bf16.gmra.mrb[0].mxu0 %v345
    %v588 = vpop.f32.mrb[0].mxu0
    %v589 = vadd.f32 %v100, %v588
    %v590 = vpop.f32.mrb[0].mxu0
    %v591 = vpop.f32.mrb[0].mxu0
    %v592 = vadd.f32 %v100, %v591
    %v593 = vpop.f32.mrb[0].mxu0
    %594 = vmatprep.mubr.bf16.mxu0 0
    %595 = vmatmul.mubr.bf16.gmra.mrb[0].mxu0 %v348
    %v596 = vpop.f32.mrb[0].mxu0
    %v597 = vadd.f32 %v100, %v596
    %v598 = vpop.f32.mrb[0].mxu0
    %v599 = vpop.f32.mrb[0].mxu0
    %v600 = vadd.f32 %v100, %v599
    %v601 = vpop.f32.mrb[0].mxu0
    %602 = vmatprep.mubr.bf16.mxu0 0
    %603 = vmatmul.mubr.bf16.gmra.mrb[0].mxu0 %v351
    %v604 = vpop.f32.mrb[0].mxu0
    %v605 = vadd.f32 %v100, %v604
    %v606 = vpop.f32.mrb[0].mxu0
    %v607 = vpop.f32.mrb[0].mxu0
    %v608 = vadd.f32 %v100, %v607
    %v609 = vpop.f32.mrb[0].mxu0
    %610 = vmatprep.mubr.bf16.mxu0 0
    %611 = vmatmul.mubr.bf16.gmra.mrb[0].mxu0 %v354
    %v612 = vpop.f32.mrb[0].mxu0
    %v613 = vadd.f32 %v100, %v612
    %v614 = vpop.f32.mrb[0].mxu0
    %v615 = vpop.f32.mrb[0].mxu0
    %v616 = vadd.f32 %v100, %v615
    %v617 = vpop.f32.mrb[0].mxu0
    %618 = vmatprep.mubr.bf16.mxu0 0
    %619 = vmatmul.mubr.bf16.gmra.mrb[0].mxu0 %v357
    %v620 = vpop.f32.mrb[0].mxu0
    %v621 = vadd.f32 %v100, %v620
    %v622 = vpop.f32.mrb[0].mxu0
    %v623 = vpop.f32.mrb[0].mxu0
    %v624 = vadd.f32 %v100, %v623
    %v625 = vpop.f32.mrb[0].mxu0
    %626 = vmatprep.mubr.bf16.mxu0 0
    %627 = vmatmul.mubr.bf16.gmra.mrb[0].mxu0 %v360
    %v628 = vpop.f32.mrb[0].mxu0
    %v629 = vadd.f32 %v100, %v628
    %v630 = vpop.f32.mrb[0].mxu0
    %v631 = vpop.f32.mrb[0].mxu0
    %v632 = vadd.f32 %v100, %v631
    %v633 = vpop.f32.mrb[0].mxu0
    %634 = vmatprep.mubr.bf16.mxu0 0
    %635 = vmatmul.mubr.bf16.gmra.mrb[0].mxu0 %v363
    %v636 = vpop.f32.mrb[0].mxu0
    %v637 = vadd.f32 %v100, %v636
    %v638 = vpop.f32.mrb[0].mxu0
    %v639 = vpop.f32.mrb[0].mxu0
    %v640 = vadd.f32 %v100, %v639
    %v641 = vpop.f32.mrb[0].mxu0
    %642 = vmatprep.mubr.bf16.mxu0 0
    %643 = vmatmul.mubr.bf16.gmra.mrb[0].mxu0 %v366
    %v644 = vpop.f32.mrb[0].mxu0
    %v645 = vadd.f32 %v100, %v644
    %v646 = vpop.f32.mrb[0].mxu0
    %v647 = vpop.f32.mrb[0].mxu0
    %v648 = vadd.f32 %v100, %v647
    %v649 = vpop.f32.mrb[0].mxu0
    %650 = vmatprep.mubr.bf16.mxu0 0
    %651 = vmatmul.mubr.bf16.gmra.mrb[0].mxu0 %v369
    %v652 = vpop.f32.mrb[0].mxu0
    %v653 = vadd.f32 %v100, %v652
    %v654 = vpop.f32.mrb[0].mxu0
    %v655 = vpop.f32.mrb[0].mxu0
    %v656 = vadd.f32 %v100, %v655
    %v657 = vpop.f32.mrb[0].mxu0
    %658 = vmatprep.mubr.bf16.mxu0 0
    %659 = vmatmul.mubr.bf16.gmra.mrb[0].mxu0 %v372
    %v660 = vpop.f32.mrb[0].mxu0
    %v661 = vadd.f32 %v100, %v660
    %v662 = vpop.f32.mrb[0].mxu0
    %v663 = vpop.f32.mrb[0].mxu0
    %v664 = vadd.f32 %v100, %v663
    %v665 = vpop.f32.mrb[0].mxu0
    %666 = vdwg.mxu0
    %667 = vst [vmem:[#allocation2] sm:$0xff] %v413
    %668 = vst [vmem:[#allocation2 + $0x8] sm:$0xff] %v416
    %669 = vst [vmem:[#allocation2 + $0x10] sm:$0xff] %v421
    %670 = vst [vmem:[#allocation2 + $0x18] sm:$0xff] %v424
    %671 = vst [vmem:[#allocation2 + $0x20] sm:$0xff] %v429
    %672 = vst [vmem:[#allocation2 + $0x28] sm:$0xff] %v432
    %673 = vst [vmem:[#allocation2 + $0x30] sm:$0xff] %v437
    %674 = vst [vmem:[#allocation2 + $0x38] sm:$0xff] %v440
    %675 = vst [vmem:[#allocation2 + $0x40] sm:$0xff] %v445
    %676 = vst [vmem:[#allocation2 + $0x48] sm:$0xff] %v448
    %677 = vst [vmem:[#allocation2 + $0x50] sm:$0xff] %v453
    %678 = vst [vmem:[#allocation2 + $0x58] sm:$0xff] %v456
    %679 = vst [vmem:[#allocation2 + $0x60] sm:$0xff] %v461
    %680 = vst [vmem:[#allocation2 + $0x68] sm:$0xff] %v464
    %681 = vst [vmem:[#allocation2 + $0x70] sm:$0xff] %v469
    %682 = vst [vmem:[#allocation2 + $0x78] sm:$0xff] %v472
    %683 = vst [vmem:[#allocation2 + $0x80] sm:$0xff] %v477
    %684 = vst [vmem:[#allocation2 + $0x88] sm:$0xff] %v480
    %685 = vst [vmem:[#allocation2 + $0x90] sm:$0xff] %v485
    %686 = vst [vmem:[#allocation2 + $0x98] sm:$0xff] %v488
    %687 = vst [vmem:[#allocation2 + $0xa0] sm:$0xff] %v493
    %688 = vst [vmem:[#allocation2 + $0xa8] sm:$0xff] %v496
    %689 = vst [vmem:[#allocation2 + $0xb0] sm:$0xff] %v501
    %690 = vst [vmem:[#allocation2 + $0xb8] sm:$0xff] %v504
    %691 = vst [vmem:[#allocation2 + $0xc0] sm:$0xff] %v509
    %692 = vst [vmem:[#allocation2 + $0xc8] sm:$0xff] %v512
    %693 = vst [vmem:[#allocation2 + $0xd0] sm:$0xff] %v517
    %694 = vst [vmem:[#allocation2 + $0xd8] sm:$0xff] %v520
    %695 = vst [vmem:[#allocation2 + $0xe0] sm:$0xff] %v525
    %696 = vst [vmem:[#allocation2 + $0xe8] sm:$0xff] %v528
    %697 = vst [vmem:[#allocation2 + $0xf0] sm:$0xff] %v533
    %698 = vst [vmem:[#allocation2 + $0xf8] sm:$0xff] %v536
    %699 = vst [vmem:[#allocation2 + $0x100] sm:$0xff] %v541
    %700 = vst [vmem:[#allocation2 + $0x108] sm:$0xff] %v544
    %701 = vst [vmem:[#allocation2 + $0x110] sm:$0xff] %v549
    %702 = vst [vmem:[#allocation2 + $0x118] sm:$0xff] %v552
    %703 = vst [vmem:[#allocation2 + $0x120] sm:$0xff] %v557
    %704 = vst [vmem:[#allocation2 + $0x128] sm:$0xff] %v560
    %705 = vst [vmem:[#allocation2 + $0x130] sm:$0xff] %v565
    %706 = vst [vmem:[#allocation2 + $0x138] sm:$0xff] %v568
    %707 = vst [vmem:[#allocation2 + $0x140] sm:$0xff] %v573
    %708 = vst [vmem:[#allocation2 + $0x148] sm:$0xff] %v576
    %709 = vst [vmem:[#allocation2 + $0x150] sm:$0xff] %v581
    %710 = vst [vmem:[#allocation2 + $0x158] sm:$0xff] %v584
    %711 = vst [vmem:[#allocation2 + $0x160] sm:$0xff] %v589
    %712 = vst [vmem:[#allocation2 + $0x168] sm:$0xff] %v592
    %713 = vst [vmem:[#allocation2 + $0x170] sm:$0xff] %v597
    %714 = vst [vmem:[#allocation2 + $0x178] sm:$0xff] %v600
    %715 = vst [vmem:[#allocation2 + $0x180] sm:$0xff] %v605
    %716 = vst [vmem:[#allocation2 + $0x188] sm:$0xff] %v608
    %717 = vst [vmem:[#allocation2 + $0x190] sm:$0xff] %v613
    %718 = vst [vmem:[#allocation2 + $0x198] sm:$0xff] %v616
    %719 = vst [vmem:[#allocation2 + $0x1a0] sm:$0xff] %v621
    %720 = vst [vmem:[#allocation2 + $0x1a8] sm:$0xff] %v624
    %721 = vst [vmem:[#allocation2 + $0x1b0] sm:$0xff] %v629
    %722 = vst [vmem:[#allocation2 + $0x1b8] sm:$0xff] %v632
    %723 = vst [vmem:[#allocation2 + $0x1c0] sm:$0xff] %v637
    %724 = vst [vmem:[#allocation2 + $0x1c8] sm:$0xff] %v640
    %725 = vst [vmem:[#allocation2 + $0x1d0] sm:$0xff] %v645
    %726 = vst [vmem:[#allocation2 + $0x1d8] sm:$0xff] %v648
    %727 = vst [vmem:[#allocation2 + $0x1e0] sm:$0xff] %v653
    %728 = vst [vmem:[#allocation2 + $0x1e8] sm:$0xff] %v656
    %729 = vst [vmem:[#allocation2 + $0x1f0] sm:$0xff] %v661
    %730 = vst [vmem:[#allocation2 + $0x1f8] sm:$0xff] %v664
    %s731 = smul.u32 0, 512
    %v732 = vlaneseq
    %v733 = vshrl.u32 %v732, 7
    %v734 = vadd.s32 %v733, 8
    %v735 = vadd.s32 %v733, 16
    %v736 = vadd.s32 %v733, 24
    %v737 = vadd.s32 %v733, 32
    %v738 = vadd.s32 %v733, 40
    %v739 = vadd.s32 %v733, 48
    %v740 = vadd.s32 %v733, 56
    %v741 = vadd.s32 %v733, 64
    %v742 = vadd.s32 %v733, 72
    %v743 = vadd.s32 %v733, 80
    %v744 = vadd.s32 %v733, 88
    %v745 = vadd.s32 %v733, 96
    %v746 = vadd.s32 %v733, 104
    %v747 = vadd.s32 %v733, 112
    %v748 = vadd.s32 %v733, 120
    %v749 = vadd.s32 %v733, 128
    %v750 = vadd.s32 %v733, 136
    %v751 = vadd.s32 %v733, 144
    %v752 = vadd.s32 %v733, 152
    %v753 = vadd.s32 %v733, 160
    %v754 = vadd.s32 %v733, 168
    %v755 = vadd.s32 %v733, 176
    %v756 = vadd.s32 %v733, 184
    %v757 = vadd.s32 %v733, 192
    %v758 = vadd.s32 %v733, 200
    %v759 = vadd.s32 %v733, 208
    %v760 = vadd.s32 %v733, 216
    %v761 = vadd.s32 %v733, 224
    %v762 = vadd.s32 %v733, 232
    %v763 = vadd.s32 %v733, 240
    %v764 = vadd.s32 %v733, 248
    %v765 = vadd.s32 %v733, 256
    %v766 = vadd.s32 %v733, 264
    %v767 = vadd.s32 %v733, 272
    %v768 = vadd.s32 %v733, 280
    %v769 = vadd.s32 %v733, 288
    %v770 = vadd.s32 %v733, 296
    %v771 = vadd.s32 %v733, 304
    %v772 = vadd.s32 %v733, 312
    %v773 = vadd.s32 %v733, 320
    %v774 = vadd.s32 %v733, 328
    %v775 = vadd.s32 %v733, 336
    %v776 = vadd.s32 %v733, 344
    %v777 = vadd.s32 %v733, 352
    %v778 = vadd.s32 %v733, 360
    %v779 = vadd.s32 %v733, 368
    %v780 = vadd.s32 %v733, 376
    %v781 = vadd.s32 %v733, 384
    %v782 = vadd.s32 %v733, 392
    %v783 = vadd.s32 %v733, 400
    %v784 = vadd.s32 %v733, 408
    %v785 = vadd.s32 %v733, 416
    %v786 = vadd.s32 %v733, 424
    %v787 = vadd.s32 %v733, 432
    %v788 = vadd.s32 %v733, 440
    %v789 = vadd.s32 %v733, 448
    %v790 = vadd.s32 %v733, 456
    %v791 = vadd.s32 %v733, 464
    %v792 = vadd.s32 %v733, 472
    %v793 = vadd.s32 %v733, 480
    %v794 = vadd.s32 %v733, 488
    %v795 = vadd.s32 %v733, 496
    %v796 = vadd.s32 %v733, 504
    %v797 = vstv %s731
    %v798 = vadd.s32 %v797, %v733
    %v799 = vadd.s32 %v797, %v734
    %v800 = vadd.s32 %v797, %v735
    %v801 = vadd.s32 %v797, %v736
    %v802 = vadd.s32 %v797, %v737
    %v803 = vadd.s32 %v797, %v738
    %v804 = vadd.s32 %v797, %v739
    %v805 = vadd.s32 %v797, %v740
    %v806 = vadd.s32 %v797, %v741
    %v807 = vadd.s32 %v797, %v742
    %v808 = vadd.s32 %v797, %v743
    %v809 = vadd.s32 %v797, %v744
    %v810 = vadd.s32 %v797, %v745
    %v811 = vadd.s32 %v797, %v746
    %v812 = vadd.s32 %v797, %v747
    %v813 = vadd.s32 %v797, %v748
    %v814 = vadd.s32 %v797, %v749
    %v815 = vadd.s32 %v797, %v750
    %v816 = vadd.s32 %v797, %v751
    %v817 = vadd.s32 %v797, %v752
    %v818 = vadd.s32 %v797, %v753
    %v819 = vadd.s32 %v797, %v754
    %v820 = vadd.s32 %v797, %v755
    %v821 = vadd.s32 %v797, %v756
    %v822 = vadd.s32 %v797, %v757
    %v823 = vadd.s32 %v797, %v758
    %v824 = vadd.s32 %v797, %v759
    %v825 = vadd.s32 %v797, %v760
    %v826 = vadd.s32 %v797, %v761
    %v827 = vadd.s32 %v797, %v762
    %v828 = vadd.s32 %v797, %v763
    %v829 = vadd.s32 %v797, %v764
    %v830 = vadd.s32 %v797, %v765
    %v831 = vadd.s32 %v797, %v766
    %v832 = vadd.s32 %v797, %v767
    %v833 = vadd.s32 %v797, %v768
    %v834 = vadd.s32 %v797, %v769
    %v835 = vadd.s32 %v797, %v770
    %v836 = vadd.s32 %v797, %v771
    %v837 = vadd.s32 %v797, %v772
    %v838 = vadd.s32 %v797, %v773
    %v839 = vadd.s32 %v797, %v774
    %v840 = vadd.s32 %v797, %v775
    %v841 = vadd.s32 %v797, %v776
    %v842 = vadd.s32 %v797, %v777
    %v843 = vadd.s32 %v797, %v778
    %v844 = vadd.s32 %v797, %v779
    %v845 = vadd.s32 %v797, %v780
    %v846 = vadd.s32 %v797, %v781
    %v847 = vadd.s32 %v797, %v782
    %v848 = vadd.s32 %v797, %v783
    %v849 = vadd.s32 %v797, %v784
    %v850 = vadd.s32 %v797, %v785
    %v851 = vadd.s32 %v797, %v786
    %v852 = vadd.s32 %v797, %v787
    %v853 = vadd.s32 %v797, %v788
    %v854 = vadd.s32 %v797, %v789
    %v855 = vadd.s32 %v797, %v790
    %v856 = vadd.s32 %v797, %v791
    %v857 = vadd.s32 %v797, %v792
    %v858 = vadd.s32 %v797, %v793
    %v859 = vadd.s32 %v797, %v794
    %v860 = vadd.s32 %v797, %v795
    %v861 = vadd.s32 %v797, %v796
    %vm862 = vcmp.lt.s32.totalorder %v798, 512
    %vm863 = vcmp.lt.s32.totalorder %v799, 512
    %vm864 = vcmp.lt.s32.totalorder %v800, 512
    %vm865 = vcmp.lt.s32.totalorder %v801, 512
    %vm866 = vcmp.lt.s32.totalorder %v802, 512
    %vm867 = vcmp.lt.s32.totalorder %v803, 512
    %vm868 = vcmp.lt.s32.totalorder %v804, 512
    %vm869 = vcmp.lt.s32.totalorder %v805, 512
    %vm870 = vcmp.lt.s32.totalorder %v806, 512
    %vm871 = vcmp.lt.s32.totalorder %v807, 512
    %vm872 = vcmp.lt.s32.totalorder %v808, 512
    %vm873 = vcmp.lt.s32.totalorder %v809, 512
    %vm874 = vcmp.lt.s32.totalorder %v810, 512
    %vm875 = vcmp.lt.s32.totalorder %v811, 512
    %vm876 = vcmp.lt.s32.totalorder %v812, 512
    %vm877 = vcmp.lt.s32.totalorder %v813, 512
    %vm878 = vcmp.lt.s32.totalorder %v814, 512
    %vm879 = vcmp.lt.s32.totalorder %v815, 512
    %vm880 = vcmp.lt.s32.totalorder %v816, 512
    %vm881 = vcmp.lt.s32.totalorder %v817, 512
    %vm882 = vcmp.lt.s32.totalorder %v818, 512
    %vm883 = vcmp.lt.s32.totalorder %v819, 512
    %vm884 = vcmp.lt.s32.totalorder %v820, 512
    %vm885 = vcmp.lt.s32.totalorder %v821, 512
    %vm886 = vcmp.lt.s32.totalorder %v822, 512
    %vm887 = vcmp.lt.s32.totalorder %v823, 512
    %vm888 = vcmp.lt.s32.totalorder %v824, 512
    %vm889 = vcmp.lt.s32.totalorder %v825, 512
    %vm890 = vcmp.lt.s32.totalorder %v826, 512
    %vm891 = vcmp.lt.s32.totalorder %v827, 512
    %vm892 = vcmp.lt.s32.totalorder %v828, 512
    %vm893 = vcmp.lt.s32.totalorder %v829, 512
    %vm894 = vcmp.lt.s32.totalorder %v830, 512
    %vm895 = vcmp.lt.s32.totalorder %v831, 512
    %vm896 = vcmp.lt.s32.totalorder %v832, 512
    %vm897 = vcmp.lt.s32.totalorder %v833, 512
    %vm898 = vcmp.lt.s32.totalorder %v834, 512
    %vm899 = vcmp.lt.s32.totalorder %v835, 512
    %vm900 = vcmp.lt.s32.totalorder %v836, 512
    %vm901 = vcmp.lt.s32.totalorder %v837, 512
    %vm902 = vcmp.lt.s32.totalorder %v838, 512
    %vm903 = vcmp.lt.s32.totalorder %v839, 512
    %vm904 = vcmp.lt.s32.totalorder %v840, 512
    %vm905 = vcmp.lt.s32.totalorder %v841, 512
    %vm906 = vcmp.lt.s32.totalorder %v842, 512
    %vm907 = vcmp.lt.s32.totalorder %v843, 512
    %vm908 = vcmp.lt.s32.totalorder %v844, 512
    %vm909 = vcmp.lt.s32.totalorder %v845, 512
    %vm910 = vcmp.lt.s32.totalorder %v846, 512
    %vm911 = vcmp.lt.s32.totalorder %v847, 512
    %vm912 = vcmp.lt.s32.totalorder %v848, 512
    %vm913 = vcmp.lt.s32.totalorder %v849, 512
    %vm914 = vcmp.lt.s32.totalorder %v850, 512
    %vm915 = vcmp.lt.s32.totalorder %v851, 512
    %vm916 = vcmp.lt.s32.totalorder %v852, 512
    %vm917 = vcmp.lt.s32.totalorder %v853, 512
    %vm918 = vcmp.lt.s32.totalorder %v854, 512
    %vm919 = vcmp.lt.s32.totalorder %v855, 512
    %vm920 = vcmp.lt.s32.totalorder %v856, 512
    %vm921 = vcmp.lt.s32.totalorder %v857, 512
    %vm922 = vcmp.lt.s32.totalorder %v858, 512
    %vm923 = vcmp.lt.s32.totalorder %v859, 512
    %vm924 = vcmp.lt.s32.totalorder %v860, 512
    %vm925 = vcmp.lt.s32.totalorder %v861, 512
    %v926 = vsel %vm862, 1.0, 0.0
    %v927 = vsel %vm863, 1.0, 0.0
    %v928 = vsel %vm864, 1.0, 0.0
    %v929 = vsel %vm865, 1.0, 0.0
    %v930 = vsel %vm866, 1.0, 0.0
    %v931 = vsel %vm867, 1.0, 0.0
    %v932 = vsel %vm868, 1.0, 0.0
    %v933 = vsel %vm869, 1.0, 0.0
    %v934 = vsel %vm870, 1.0, 0.0
    %v935 = vsel %vm871, 1.0, 0.0
    %v936 = vsel %vm872, 1.0, 0.0
    %v937 = vsel %vm873, 1.0, 0.0
    %v938 = vsel %vm874, 1.0, 0.0
    %v939 = vsel %vm875, 1.0, 0.0
    %v940 = vsel %vm876, 1.0, 0.0
    %v941 = vsel %vm877, 1.0, 0.0
    %v942 = vsel %vm878, 1.0, 0.0
    %v943 = vsel %vm879, 1.0, 0.0
    %v944 = vsel %vm880, 1.0, 0.0
    %v945 = vsel %vm881, 1.0, 0.0
    %v946 = vsel %vm882, 1.0, 0.0
    %v947 = vsel %vm883, 1.0, 0.0
    %v948 = vsel %vm884, 1.0, 0.0
    %v949 = vsel %vm885, 1.0, 0.0
    %v950 = vsel %vm886, 1.0, 0.0
    %v951 = vsel %vm887, 1.0, 0.0
    %v952 = vsel %vm888, 1.0, 0.0
    %v953 = vsel %vm889, 1.0, 0.0
    %v954 = vsel %vm890, 1.0, 0.0
    %v955 = vsel %vm891, 1.0, 0.0
    %v956 = vsel %vm892, 1.0, 0.0
    %v957 = vsel %vm893, 1.0, 0.0
    %v958 = vsel %vm894, 1.0, 0.0
    %v959 = vsel %vm895, 1.0, 0.0
    %v960 = vsel %vm896, 1.0, 0.0
    %v961 = vsel %vm897, 1.0, 0.0
    %v962 = vsel %vm898, 1.0, 0.0
    %v963 = vsel %vm899, 1.0, 0.0
    %v964 = vsel %vm900, 1.0, 0.0
    %v965 = vsel %vm901, 1.0, 0.0
    %v966 = vsel %vm902, 1.0, 0.0
    %v967 = vsel %vm903, 1.0, 0.0
    %v968 = vsel %vm904, 1.0, 0.0
    %v969 = vsel %vm905, 1.0, 0.0
    %v970 = vsel %vm906, 1.0, 0.0
    %v971 = vsel %vm907, 1.0, 0.0
    %v972 = vsel %vm908, 1.0, 0.0
    %v973 = vsel %vm909, 1.0, 0.0
    %v974 = vsel %vm910, 1.0, 0.0
    %v975 = vsel %vm911, 1.0, 0.0
    %v976 = vsel %vm912, 1.0, 0.0
    %v977 = vsel %vm913, 1.0, 0.0
    %v978 = vsel %vm914, 1.0, 0.0
    %v979 = vsel %vm915, 1.0, 0.0
    %v980 = vsel %vm916, 1.0, 0.0
    %v981 = vsel %vm917, 1.0, 0.0
    %v982 = vsel %vm918, 1.0, 0.0
    %v983 = vsel %vm919, 1.0, 0.0
    %v984 = vsel %vm920, 1.0, 0.0
    %v985 = vsel %vm921, 1.0, 0.0
    %v986 = vsel %vm922, 1.0, 0.0
    %v987 = vsel %vm923, 1.0, 0.0
    %v988 = vsel %vm924, 1.0, 0.0
    %v989 = vsel %vm925, 1.0, 0.0
    %v990 = vmul.f32 %v413, %v926
    %v991 = vmul.f32 %v416, %v927
    %v992 = vmul.f32 %v421, %v928
    %v993 = vmul.f32 %v424, %v929
    %v994 = vmul.f32 %v429, %v930
    %v995 = vmul.f32 %v432, %v931
    %v996 = vmul.f32 %v437, %v932
    %v997 = vmul.f32 %v440, %v933
    %v998 = vmul.f32 %v445, %v934
    %v999 = vmul.f32 %v448, %v935
    %v1000 = vmul.f32 %v453, %v936
    %v1001 = vmul.f32 %v456, %v937
    %v1002 = vmul.f32 %v461, %v938
    %v1003 = vmul.f32 %v464, %v939
    %v1004 = vmul.f32 %v469, %v940
    %v1005 = vmul.f32 %v472, %v941
    %v1006 = vmul.f32 %v477, %v942
    %v1007 = vmul.f32 %v480, %v943
    %v1008 = vmul.f32 %v485, %v944
    %v1009 = vmul.f32 %v488, %v945
    %v1010 = vmul.f32 %v493, %v946
    %v1011 = vmul.f32 %v496, %v947
    %v1012 = vmul.f32 %v501, %v948
    %v1013 = vmul.f32 %v504, %v949
    %v1014 = vmul.f32 %v509, %v950
    %v1015 = vmul.f32 %v512, %v951
    %v1016 = vmul.f32 %v517, %v952
    %v1017 = vmul.f32 %v520, %v953
    %v1018 = vmul.f32 %v525, %v954
    %v1019 = vmul.f32 %v528, %v955
    %v1020 = vmul.f32 %v533, %v956
    %v1021 = vmul.f32 %v536, %v957
    %v1022 = vmul.f32 %v541, %v958
    %v1023 = vmul.f32 %v544, %v959
    %v1024 = vmul.f32 %v549, %v960
    %v1025 = vmul.f32 %v552, %v961
    %v1026 = vmul.f32 %v557, %v962
    %v1027 = vmul.f32 %v560, %v963
    %v1028 = vmul.f32 %v565, %v964
    %v1029 = vmul.f32 %v568, %v965
    %v1030 = vmul.f32 %v573, %v966
    %v1031 = vmul.f32 %v576, %v967
    %v1032 = vmul.f32 %v581, %v968
    %v1033 = vmul.f32 %v584, %v969
    %v1034 = vmul.f32 %v589, %v970
    %v1035 = vmul.f32 %v592, %v971
    %v1036 = vmul.f32 %v597, %v972
    %v1037 = vmul.f32 %v600, %v973
    %v1038 = vmul.f32 %v605, %v974
    %v1039 = vmul.f32 %v608, %v975
    %v1040 = vmul.f32 %v613, %v976
    %v1041 = vmul.f32 %v616, %v977
    %v1042 = vmul.f32 %v621, %v978
    %v1043 = vmul.f32 %v624, %v979
    %v1044 = vmul.f32 %v629, %v980
    %v1045 = vmul.f32 %v632, %v981
    %v1046 = vmul.f32 %v637, %v982
    %v1047 = vmul.f32 %v640, %v983
    %v1048 = vmul.f32 %v645, %v984
    %v1049 = vmul.f32 %v648, %v985
    %v1050 = vmul.f32 %v653, %v986
    %v1051 = vmul.f32 %v656, %v987
    %v1052 = vmul.f32 %v661, %v988
    %v1053 = vmul.f32 %v664, %v989
    %v1054 = vld [vmem:[#allocation4] sm:$0x1]
    %v1055 = vadd.f32 %v990, %v991
    %v1056 = vadd.f32 %v1055, %v992
    %v1057 = vadd.f32 %v1056, %v993
    %v1058 = vadd.f32 %v1057, %v994
    %v1059 = vadd.f32 %v1058, %v995
    %v1060 = vadd.f32 %v1059, %v996
    %v1061 = vadd.f32 %v1060, %v997
    %v1062 = vadd.f32 %v1061, %v998
    %v1063 = vadd.f32 %v1062, %v999
    %v1064 = vadd.f32 %v1063, %v1000
    %v1065 = vadd.f32 %v1064, %v1001
    %v1066 = vadd.f32 %v1065, %v1002
    %v1067 = vadd.f32 %v1066, %v1003
    %v1068 = vadd.f32 %v1067, %v1004
    %v1069 = vadd.f32 %v1068, %v1005
    %v1070 = vadd.f32 %v1069, %v1006
    %v1071 = vadd.f32 %v1070, %v1007
    %v1072 = vadd.f32 %v1071, %v1008
    %v1073 = vadd.f32 %v1072, %v1009
    %v1074 = vadd.f32 %v1073, %v1010
    %v1075 = vadd.f32 %v1074, %v1011
    %v1076 = vadd.f32 %v1075, %v1012
    %v1077 = vadd.f32 %v1076, %v1013
    %v1078 = vadd.f32 %v1077, %v1014
    %v1079 = vadd.f32 %v1078, %v1015
    %v1080 = vadd.f32 %v1079, %v1016
    %v1081 = vadd.f32 %v1080, %v1017
    %v1082 = vadd.f32 %v1081, %v1018
    %v1083 = vadd.f32 %v1082, %v1019
    %v1084 = vadd.f32 %v1083, %v1020
    %v1085 = vadd.f32 %v1084, %v1021
    %v1086 = vadd.f32 %v1085, %v1022
    %v1087 = vadd.f32 %v1086, %v1023
    %v1088 = vadd.f32 %v1087, %v1024
    %v1089 = vadd.f32 %v1088, %v1025
    %v1090 = vadd.f32 %v1089, %v1026
    %v1091 = vadd.f32 %v1090, %v1027
    %v1092 = vadd.f32 %v1091, %v1028
    %v1093 = vadd.f32 %v1092, %v1029
    %v1094 = vadd.f32 %v1093, %v1030
    %v1095 = vadd.f32 %v1094, %v1031
    %v1096 = vadd.f32 %v1095, %v1032
    %v1097 = vadd.f32 %v1096, %v1033
    %v1098 = vadd.f32 %v1097, %v1034
    %v1099 = vadd.f32 %v1098, %v1035
    %v1100 = vadd.f32 %v1099, %v1036
    %v1101 = vadd.f32 %v1100, %v1037
    %v1102 = vadd.f32 %v1101, %v1038
    %v1103 = vadd.f32 %v1102, %v1039
    %v1104 = vadd.f32 %v1103, %v1040
    %v1105 = vadd.f32 %v1104, %v1041
    %v1106 = vadd.f32 %v1105, %v1042
    %v1107 = vadd.f32 %v1106, %v1043
    %v1108 = vadd.f32 %v1107, %v1044
    %v1109 = vadd.f32 %v1108, %v1045
    %v1110 = vadd.f32 %v1109, %v1046
    %v1111 = vadd.f32 %v1110, %v1047
    %v1112 = vadd.f32 %v1111, %v1048
    %v1113 = vadd.f32 %v1112, %v1049
    %v1114 = vadd.f32 %v1113, %v1050
    %v1115 = vadd.f32 %v1114, %v1051
    %v1116 = vadd.f32 %v1115, %v1052
    %v1117 = vadd.f32 %v1116, %v1053
    %v1118 = vrot.slane %v1117, 4
    %v1119 = vadd.f32 %v1117, %v1118
    %v1120 = vrot.slane %v1119, 2
    %v1121 = vadd.f32 %v1119, %v1120
    %v1122 = vrot.slane %v1121, 1
    %v1123 = vadd.f32 %v1121, %v1122
    %v1124 = vadd.f32 %v1054, %v1123
    %1125 = vst [vmem:[#allocation4] sm:$0x1] %v1124
    %v1126 = vld [vmem:[#allocation6] sm:$0x1]
    %v1127 = vmul.f32 %v990, %v413
    %v1128 = vmul.f32 %v991, %v416
    %v1129 = vmul.f32 %v992, %v421
    %v1130 = vmul.f32 %v993, %v424
    %v1131 = vmul.f32 %v994, %v429
    %v1132 = vmul.f32 %v995, %v432
    %v1133 = vmul.f32 %v996, %v437
    %v1134 = vmul.f32 %v997, %v440
    %v1135 = vmul.f32 %v998, %v445
    %v1136 = vmul.f32 %v999, %v448
    %v1137 = vmul.f32 %v1000, %v453
    %v1138 = vmul.f32 %v1001, %v456
    %v1139 = vmul.f32 %v1002, %v461
    %v1140 = vmul.f32 %v1003, %v464
    %v1141 = vmul.f32 %v1004, %v469
    %v1142 = vmul.f32 %v1005, %v472
    %v1143 = vmul.f32 %v1006, %v477
    %v1144 = vmul.f32 %v1007, %v480
    %v1145 = vmul.f32 %v1008, %v485
    %v1146 = vmul.f32 %v1009, %v488
    %v1147 = vmul.f32 %v1010, %v493
    %v1148 = vmul.f32 %v1011, %v496
    %v1149 = vmul.f32 %v1012, %v501
    %v1150 = vmul.f32 %v1013, %v504
    %v1151 = vmul.f32 %v1014, %v509
    %v1152 = vmul.f32 %v1015, %v512
    %v1153 = vmul.f32 %v1016, %v517
    %v1154 = vmul.f32 %v1017, %v520
    %v1155 = vmul.f32 %v1018, %v525
    %v1156 = vmul.f32 %v1019, %v528
    %v1157 = vmul.f32 %v1020, %v533
    %v1158 = vmul.f32 %v1021, %v536
    %v1159 = vmul.f32 %v1022, %v541
    %v1160 = vmul.f32 %v1023, %v544
    %v1161 = vmul.f32 %v1024, %v549
    %v1162 = vmul.f32 %v1025, %v552
    %v1163 = vmul.f32 %v1026, %v557
    %v1164 = vmul.f32 %v1027, %v560
    %v1165 = vmul.f32 %v1028, %v565
    %v1166 = vmul.f32 %v1029, %v568
    %v1167 = vmul.f32 %v1030, %v573
    %v1168 = vmul.f32 %v1031, %v576
    %v1169 = vmul.f32 %v1032, %v581
    %v1170 = vmul.f32 %v1033, %v584
    %v1171 = vmul.f32 %v1034, %v589
    %v1172 = vmul.f32 %v1035, %v592
    %v1173 = vmul.f32 %v1036, %v597
    %v1174 = vmul.f32 %v1037, %v600
    %v1175 = vmul.f32 %v1038, %v605
    %v1176 = vmul.f32 %v1039, %v608
    %v1177 = vmul.f32 %v1040, %v613
    %v1178 = vmul.f32 %v1041, %v616
    %v1179 = vmul.f32 %v1042, %v621
    %v1180 = vmul.f32 %v1043, %v624
    %v1181 = vmul.f32 %v1044, %v629
    %v1182 = vmul.f32 %v1045, %v632
    %v1183 = vmul.f32 %v1046, %v637
    %v1184 = vmul.f32 %v1047, %v640
    %v1185 = vmul.f32 %v1048, %v645
    %v1186 = vmul.f32 %v1049, %v648
    %v1187 = vmul.f32 %v1050, %v653
    %v1188 = vmul.f32 %v1051, %v656
    %v1189 = vmul.f32 %v1052, %v661
    %v1190 = vmul.f32 %v1053, %v664
    %v1191 = vadd.f32 %v1127, %v1128
    %v1192 = vadd.f32 %v1191, %v1129
    %v1193 = vadd.f32 %v1192, %v1130
    %v1194 = vadd.f32 %v1193, %v1131
    %v1195 = vadd.f32 %v1194, %v1132
    %v1196 = vadd.f32 %v1195, %v1133
    %v1197 = vadd.f32 %v1196, %v1134
    %v1198 = vadd.f32 %v1197, %v1135
    %v1199 = vadd.f32 %v1198, %v1136
    %v1200 = vadd.f32 %v1199, %v1137
    %v1201 = vadd.f32 %v1200, %v1138
    %v1202 = vadd.f32 %v1201, %v1139
    %v1203 = vadd.f32 %v1202, %v1140
    %v1204 = vadd.f32 %v1203, %v1141
    %v1205 = vadd.f32 %v1204, %v1142
    %v1206 = vadd.f32 %v1205, %v1143
    %v1207 = vadd.f32 %v1206, %v1144
    %v1208 = vadd.f32 %v1207, %v1145
    %v1209 = vadd.f32 %v1208, %v1146
    %v1210 = vadd.f32 %v1209, %v1147
    %v1211 = vadd.f32 %v1210, %v1148
    %v1212 = vadd.f32 %v1211, %v1149
    %v1213 = vadd.f32 %v1212, %v1150
    %v1214 = vadd.f32 %v1213, %v1151
    %v1215 = vadd.f32 %v1214, %v1152
    %v1216 = vadd.f32 %v1215, %v1153
    %v1217 = vadd.f32 %v1216, %v1154
    %v1218 = vadd.f32 %v1217, %v1155
    %v1219 = vadd.f32 %v1218, %v1156
    %v1220 = vadd.f32 %v1219, %v1157
    %v1221 = vadd.f32 %v1220, %v1158
    %v1222 = vadd.f32 %v1221, %v1159
    %v1223 = vadd.f32 %v1222, %v1160
    %v1224 = vadd.f32 %v1223, %v1161
    %v1225 = vadd.f32 %v1224, %v1162
    %v1226 = vadd.f32 %v1225, %v1163
    %v1227 = vadd.f32 %v1226, %v1164
    %v1228 = vadd.f32 %v1227, %v1165
    %v1229 = vadd.f32 %v1228, %v1166
    %v1230 = vadd.f32 %v1229, %v1167
    %v1231 = vadd.f32 %v1230, %v1168
    %v1232 = vadd.f32 %v1231, %v1169
    %v1233 = vadd.f32 %v1232, %v1170
    %v1234 = vadd.f32 %v1233, %v1171
    %v1235 = vadd.f32 %v1234, %v1172
    %v1236 = vadd.f32 %v1235, %v1173
    %v1237 = vadd.f32 %v1236, %v1174
    %v1238 = vadd.f32 %v1237, %v1175
    %v1239 = vadd.f32 %v1238, %v1176
    %v1240 = vadd.f32 %v1239, %v1177
    %v1241 = vadd.f32 %v1240, %v1178
    %v1242 = vadd.f32 %v1241, %v1179
    %v1243 = vadd.f32 %v1242, %v1180
    %v1244 = vadd.f32 %v1243, %v1181
    %v1245 = vadd.f32 %v1244, %v1182
    %v1246 = vadd.f32 %v1245, %v1183
    %v1247 = vadd.f32 %v1246, %v1184
    %v1248 = vadd.f32 %v1247, %v1185
    %v1249 = vadd.f32 %v1248, %v1186
    %v1250 = vadd.f32 %v1249, %v1187
    %v1251 = vadd.f32 %v1250, %v1188
    %v1252 = vadd.f32 %v1251, %v1189
    %v1253 = vadd.f32 %v1252, %v1190
    %v1254 = vrot.slane %v1253, 4
    %v1255 = vadd.f32 %v1253, %v1254
    %v1256 = vrot.slane %v1255, 2
    %v1257 = vadd.f32 %v1255, %v1256
    %v1258 = vrot.slane %v1257, 1
    %v1259 = vadd.f32 %v1257, %v1258
    %v1260 = vadd.f32 %v1126, %v1259
    %1261 = vst [vmem:[#allocation6] sm:$0x1] %v1260
    // Predicated region
    $region18: #{tpu_custom_call.1} parent=1 // pred_check
      _
    $region19: #{tpu_custom_call.1} parent=1 // pred_check_branch
      %1263 = sbr.rel (0) target = $region21
    $region20: #{tpu_custom_call.1} parent=1 // pred_region
      %s1265 = ssub.s32 8192, 8192
      %1266 = vsyncadd [#allocation3], %s1265
      %s1267 = sshll.u32 [#allocation2], 4
      %s1268 = int_to_ptr.vmem [resolvable:$true] %s1267
      %1273 = dma.vmem_to_hbm [thread:$0]  %s1268, 8192, %s3, [#allocation3], 128, 128, 8
    $region21: #{tpu_custom_call.1} parent=1 // pred_fallthru
      _
    // Predicated region
    $region22: #{tpu_custom_call.1} parent=1 // pred_check
      _
    $region23: #{tpu_custom_call.1} parent=1 // pred_check_branch
      %1275 = sbr.rel (0) target = $region25
    $region24: #{tpu_custom_call.1} parent=1 // pred_region
      %s1277 = ssub.s32 16, 16
      %1278 = vsyncadd [#allocation5], %s1277
      %s1280 = sshll.u32 [#allocation4], 4
      %s1281 = int_to_ptr.vmem [resolvable:$true] %s1280
      %1283 = dma.vmem_to_hbm [thread:$0]  %s1281, 16, %s4, [#allocation5]
    $region25: #{tpu_custom_call.1} parent=1 // pred_fallthru
      _
    // Predicated region
    $region26: #{tpu_custom_call.1} parent=1 // pred_check
      _
    $region27: #{tpu_custom_call.1} parent=1 // pred_check_branch
      %1285 = sbr.rel (0) target = $region29
    $region28: #{tpu_custom_call.1} parent=1 // pred_region
      %s1287 = ssub.s32 16, 16
      %1288 = vsyncadd [#allocation5], %s1287
      %s1290 = sshll.u32 [#allocation6], 4
      %s1291 = int_to_ptr.vmem [resolvable:$true] %s1290
      %1293 = dma.vmem_to_hbm [thread:$0]  %s1291, 16, %s5, [#allocation5]
    $region29: #{tpu_custom_call.1} parent=1 // pred_fallthru
      _
    // Predicated region
    $region30: #{tpu_custom_call.1} parent=1 // pred_check
      _
    $region31: #{tpu_custom_call.1} parent=1 // pred_check_branch
      %1295 = sbr.rel (0) target = $region33
    $region32: #{tpu_custom_call.1} parent=1 // pred_region
      %1296 = dma.done [#allocation3], 8192
    $region33: #{tpu_custom_call.1} parent=1 // pred_fallthru
      _
    // Predicated region
    $region34: #{tpu_custom_call.1} parent=1 // pred_check
      _
    $region35: #{tpu_custom_call.1} parent=1 // pred_check_branch
      %1298 = sbr.rel (0) target = $region37
    $region36: #{tpu_custom_call.1} parent=1 // pred_region
      %1299 = dma.done [#allocation5], 16
    $region37: #{tpu_custom_call.1} parent=1 // pred_fallthru
      _
    // Predicated region
    $region38: #{tpu_custom_call.1} parent=1 // pred_check
      _
    $region39: #{tpu_custom_call.1} parent=1 // pred_check_branch
      %1301 = sbr.rel (0) target = $region41
    $region40: #{tpu_custom_call.1} parent=1 // pred_region
      %1302 = dma.done [#allocation5], 16
    $region41: #{tpu_custom_call.1} parent=1 // pred_fallthru
      _
    %1303 = vsyncpa [#allocation3], 1
    %1304 = vsyncpa [#allocation5], 1

</llo_original>
